<compile_context>
chip_gen: v7x
topology: tpu7x:2x2x1
jax: 0.10.0
libtpu: 0.0.40
codegen_flags: <defaults>
</compile_context>

<pallas_src>
import functools

import jax
import jax.numpy as jnp
from jax.experimental import pallas as pl
from jax.experimental.pallas import tpu as pltpu

D_IN = 3        # x, y, z coordinates
HID = 32        # hidden width of base_net
D_OUT = 1       # scalar potential
TILE_CAP = 4096     # max batch tile (lanes); multiple of 128
TARGET_STEPS = 8    # aim for ~8 grid steps before hitting the cap


def _choose_tile(n):
    """Adaptive lane tile: round_up(cdiv(n, TARGET_STEPS), 128), clamped."""
    tn = -(-n // TARGET_STEPS)              # cdiv
    tn = ((tn + 127) // 128) * 128          # round up to 128 lanes
    return max(128, min(tn, TILE_CAP))


def derivnet_kernel(x_ref, w1_ref, b1_ref, w2_ref, b2_ref, w3_ref, w3t_ref,
                    w2t_ref, w1t_ref, b3_ref, out_ref):
    x = x_ref[...]                                    # [3, TN]   (batch on lanes)

    # ---- forward (base_net), lane-dense ----
    z1 = jnp.dot(w1_ref[...], x,
                 preferred_element_type=jnp.float32) + b1_ref[...]    # [H, TN]
    h1 = jnp.tanh(z1)
    z2 = jnp.dot(w2_ref[...], h1,
                 preferred_element_type=jnp.float32) + b2_ref[...]    # [H, TN]
    h2 = jnp.tanh(z2)
    y = jnp.dot(w3_ref[...], h2,
                preferred_element_type=jnp.float32) + b3_ref[0, 0]    # [1, TN]

    # ---- analytic input-gradient (manual backprop, grad_outputs = ones) ----
    g2 = (1.0 - h2 * h2) * w3t_ref[...]                               # [H, TN]
    g1 = jnp.dot(w2t_ref[...], g2,
                 preferred_element_type=jnp.float32) * (1.0 - h1 * h1)  # [H, TN]
    dydx = jnp.dot(w1t_ref[...], g1,
                   preferred_element_type=jnp.float32)                # [3, TN]

    # Fused lane-dense output slab, single full-block store: row 0 = y, 1..3 = dy/dx
    out_ref[...] = jnp.concatenate([y, dydx], axis=0)                 # [4, TN]


@functools.partial(jax.jit, static_argnames=("tile_n",))
def _derivnet_call(x, params, tile_n):
    w1, b1, w2, b2, w3, b3 = params
    n = x.shape[0]
    n_pad = ((n + tile_n - 1) // tile_n) * tile_n

    # One-time layout work (outside the kernel, grid-invariant):
    x_t = jnp.pad(x.astype(jnp.float32).T, ((0, 0), (0, n_pad - n)))  # [3, n_pad]
    b1c = b1.reshape(HID, 1)          # column biases: broadcast along lanes
    b2c = b2.reshape(HID, 1)
    w3r = w3.reshape(D_OUT, HID)      # [1, H]  (MXU y-reduction)
    w3t = w3r.T                       # [H, 1]  (broadcast factor for g2)
    w2t = w2.T                        # [H, H]
    w1t = w1.T                        # [3, H]
    b3s = b3.reshape(1, 1)            # scalar -> SMEM

    grid = (n_pad // tile_n,)
    const = lambda i: (0, 0)
    out = pl.pallas_call(
        derivnet_kernel,
        out_shape=jax.ShapeDtypeStruct((D_OUT + D_IN, n_pad), jnp.float32),
        grid_spec=pltpu.PrefetchScalarGridSpec(
            num_scalar_prefetch=0,
            grid=grid,
            in_specs=[
                pl.BlockSpec((D_IN, tile_n), lambda i: (0, i)),    # X tile [3, TN]
                pl.BlockSpec((HID, D_IN), const),                  # W1
                pl.BlockSpec((HID, 1), const),                     # b1 (column)
                pl.BlockSpec((HID, HID), const),                   # W2
                pl.BlockSpec((HID, 1), const),                     # b2 (column)
                pl.BlockSpec((D_OUT, HID), const),                 # W3  [1, H]
                pl.BlockSpec((HID, D_OUT), const),                 # W3^T [H, 1]
                pl.BlockSpec((HID, HID), const),                   # W2^T
                pl.BlockSpec((D_IN, HID), const),                  # W1^T
                pl.BlockSpec(memory_space=pltpu.MemorySpace.SMEM), # b3 scalar
            ],
            out_specs=pl.BlockSpec((D_OUT + D_IN, tile_n), lambda i: (0, i)),
        ),
        compiler_params=pltpu.CompilerParams(
            dimension_semantics=("parallel",)),
    )(x_t, w1, b1c, w2, b2c, w3r, w3t, w2t, w1t, b3s)

    # Row slices of the lane-major slab (no wrapper-side transpose of [4, n_pad]).
    y_out = out[0, :n][:, None]
    g0 = out[1, :n][:, None]
    g1 = out[2, :n][:, None]
    g2 = out[3, :n][:, None]
    return y_out, g0, g1, g2


def derivnet(x, params):
    """Returns (y, dydx0, dydx1, dydx2) exactly like DerivNet.forward."""
    tile_n = _choose_tile(x.shape[0])
    return _derivnet_call(x, params, tile_n)


def init_params(key):
    k1, k2, k3, k4, k5, k6 = jax.random.split(key, 6)
    scale = 0.5
    w1 = scale * jax.random.normal(k1, (HID, D_IN), jnp.float32)
    b1 = 0.1 * jax.random.normal(k4, (1, HID), jnp.float32)
    w2 = scale * jax.random.normal(k2, (HID, HID), jnp.float32) / jnp.sqrt(HID)
    b2 = 0.1 * jax.random.normal(k5, (1, HID), jnp.float32)
    w3 = scale * jax.random.normal(k3, (D_OUT, HID), jnp.float32) / jnp.sqrt(HID)
    b3 = 0.1 * jax.random.normal(k6, (1, D_OUT), jnp.float32)
    return (w1, b1, w2, b2, w3, b3)


def _ref_scalar(x_row, params):
    """Pure-JAX reference of base_net on a single sample (for autodiff check)."""
    w1, b1, w2, b2, w3, b3 = params
    h1 = jnp.tanh(x_row @ w1.T + b1[0])
    h2 = jnp.tanh(h1 @ w2.T + b2[0])
    return (h2 @ w3.T + b3[0])[0]


if __name__ == "__main__":
    key = jax.random.PRNGKey(0)
    kp, kx = jax.random.split(key)
    params = init_params(kp)

    N = 300  # number of (x, y, z) position samples (exercises padded tail + grid>=2)
    x = jax.random.normal(kx, (N, D_IN), jnp.float32)

    y, g0, g1, g2 = jax.block_until_ready(derivnet(x, params))

    # Cross-check against JAX autodiff of the pure-JAX base_net.
    y_ref = jax.vmap(lambda r: _ref_scalar(r, params))(x)[:, None]
    dydx_ref = jax.vmap(jax.grad(lambda r: _ref_scalar(r, params)))(x)
    assert y.shape == (N, 1) and g0.shape == (N, 1)
    assert jnp.allclose(y, y_ref, atol=1e-4), "forward mismatch"
    assert jnp.allclose(jnp.concatenate([g0, g1, g2], axis=1), dydx_ref,
                        atol=1e-4), "gradient mismatch"

    print("KERNEL_OK")
</pallas_src>

<mosaic_0001>
module attributes {stable_mosaic.version = 11 : i64} {
  func.func @derivnet_kernel(%arg0: i32, %arg1: memref<3x128xf32, #tpu.memory_space<vmem>>, %arg2: memref<32x3xf32, #tpu.memory_space<vmem>>, %arg3: memref<32x1xf32, #tpu.memory_space<vmem>>, %arg4: memref<32x32xf32, #tpu.memory_space<vmem>>, %arg5: memref<32x1xf32, #tpu.memory_space<vmem>>, %arg6: memref<1x32xf32, #tpu.memory_space<vmem>>, %arg7: memref<32x1xf32, #tpu.memory_space<vmem>>, %arg8: memref<32x32xf32, #tpu.memory_space<vmem>>, %arg9: memref<3x32xf32, #tpu.memory_space<vmem>>, %arg10: memref<1x1xf32, #tpu.memory_space<smem>>, %arg11: memref<4x128xf32, #tpu.memory_space<vmem>>) attributes {dimension_semantics = [#tpu.dimension_semantics<parallel>], iteration_bounds = array<i64: 3>, scalar_prefetch = 0 : i64, scratch_operands = 0 : i64, tpu.core_type = #tpu.core_type<tc>, window_params = [{transform_indices = @transform_0, window_bounds = array<i64: 3, 128>}, {pipeline_mode = #tpu.pipeline_mode<synchronous>, transform_indices = @transform_1, window_bounds = array<i64: 32, 3>}, {pipeline_mode = #tpu.pipeline_mode<synchronous>, transform_indices = @transform_2, window_bounds = array<i64: 32, 1>}, {pipeline_mode = #tpu.pipeline_mode<synchronous>, transform_indices = @transform_3, window_bounds = array<i64: 32, 32>}, {pipeline_mode = #tpu.pipeline_mode<synchronous>, transform_indices = @transform_4, window_bounds = array<i64: 32, 1>}, {pipeline_mode = #tpu.pipeline_mode<synchronous>, transform_indices = @transform_5, window_bounds = array<i64: 1, 32>}, {pipeline_mode = #tpu.pipeline_mode<synchronous>, transform_indices = @transform_6, window_bounds = array<i64: 32, 1>}, {pipeline_mode = #tpu.pipeline_mode<synchronous>, transform_indices = @transform_7, window_bounds = array<i64: 32, 32>}, {pipeline_mode = #tpu.pipeline_mode<synchronous>, transform_indices = @transform_8, window_bounds = array<i64: 3, 32>}, {transform_indices = @transform_9, window_bounds = array<i64: 1, 1>}, {transform_indices = @transform_10, window_bounds = array<i64: 4, 128>}]} {
    %c0 = arith.constant 0 : index
    %c0_0 = arith.constant 0 : index
    %0 = vector.load %arg1[%c0, %c0_0] : memref<3x128xf32, #tpu.memory_space<vmem>>, vector<3x128xf32>
    %c0_1 = arith.constant 0 : index
    %c0_2 = arith.constant 0 : index
    %1 = vector.load %arg2[%c0_1, %c0_2] : memref<32x3xf32, #tpu.memory_space<vmem>>, vector<32x3xf32>
    %cst = arith.constant dense<0.000000e+00> : vector<32x128xf32>
    %2 = tpu.matmul %1, %0, %cst {dimension_numbers = #tpu.dot_dimension_numbers<[1], [0], [0], [1], [0, 0, 1, 1], [], []>} : vector<32x3xf32>, vector<3x128xf32>, vector<32x128xf32> -> vector<32x128xf32>
    %c0_3 = arith.constant 0 : index
    %c0_4 = arith.constant 0 : index
    %3 = vector.load %arg3[%c0_3, %c0_4] : memref<32x1xf32, #tpu.memory_space<vmem>>, vector<32x1xf32>
    %4 = vector.broadcast %3 : vector<32x1xf32> to vector<32x128xf32>
    %5 = arith.addf %2, %4 : vector<32x128xf32>
    %6 = math.tanh %5 : vector<32x128xf32>
    %c0_5 = arith.constant 0 : index
    %c0_6 = arith.constant 0 : index
    %7 = vector.load %arg4[%c0_5, %c0_6] : memref<32x32xf32, #tpu.memory_space<vmem>>, vector<32x32xf32>
    %cst_7 = arith.constant dense<0.000000e+00> : vector<32x128xf32>
    %8 = tpu.matmul %7, %6, %cst_7 {dimension_numbers = #tpu.dot_dimension_numbers<[1], [0], [0], [1], [0, 0, 1, 1], [], []>} : vector<32x32xf32>, vector<32x128xf32>, vector<32x128xf32> -> vector<32x128xf32>
    %c0_8 = arith.constant 0 : index
    %c0_9 = arith.constant 0 : index
    %9 = vector.load %arg5[%c0_8, %c0_9] : memref<32x1xf32, #tpu.memory_space<vmem>>, vector<32x1xf32>
    %10 = vector.broadcast %9 : vector<32x1xf32> to vector<32x128xf32>
    %11 = arith.addf %8, %10 : vector<32x128xf32>
    %12 = math.tanh %11 : vector<32x128xf32>
    %c0_10 = arith.constant 0 : index
    %c0_11 = arith.constant 0 : index
    %13 = vector.load %arg6[%c0_10, %c0_11] : memref<1x32xf32, #tpu.memory_space<vmem>>, vector<1x32xf32>
    %cst_12 = arith.constant dense<0.000000e+00> : vector<1x128xf32>
    %14 = tpu.matmul %13, %12, %cst_12 {dimension_numbers = #tpu.dot_dimension_numbers<[1], [0], [0], [1], [0, 0, 1, 1], [], []>} : vector<1x32xf32>, vector<32x128xf32>, vector<1x128xf32> -> vector<1x128xf32>
    %c0_13 = arith.constant 0 : index
    %c0_14 = arith.constant 0 : index
    %15 = memref.load %arg10[%c0_13, %c0_14] : memref<1x1xf32, #tpu.memory_space<smem>>
    %16 = vector.broadcast %15 : f32 to vector<1x128xf32>
    %17 = arith.addf %14, %16 : vector<1x128xf32>
    %18 = arith.mulf %12, %12 : vector<32x128xf32>
    %cst_15 = arith.constant 1.000000e+00 : f32
    %19 = vector.broadcast %cst_15 : f32 to vector<32x128xf32>
    %20 = arith.subf %19, %18 : vector<32x128xf32>
    %c0_16 = arith.constant 0 : index
    %c0_17 = arith.constant 0 : index
    %21 = vector.load %arg7[%c0_16, %c0_17] : memref<32x1xf32, #tpu.memory_space<vmem>>, vector<32x1xf32>
    %22 = vector.broadcast %21 : vector<32x1xf32> to vector<32x128xf32>
    %23 = arith.mulf %20, %22 : vector<32x128xf32>
    %c0_18 = arith.constant 0 : index
    %c0_19 = arith.constant 0 : index
    %24 = vector.load %arg8[%c0_18, %c0_19] : memref<32x32xf32, #tpu.memory_space<vmem>>, vector<32x32xf32>
    %cst_20 = arith.constant dense<0.000000e+00> : vector<32x128xf32>
    %25 = tpu.matmul %24, %23, %cst_20 {dimension_numbers = #tpu.dot_dimension_numbers<[1], [0], [0], [1], [0, 0, 1, 1], [], []>} : vector<32x32xf32>, vector<32x128xf32>, vector<32x128xf32> -> vector<32x128xf32>
    %26 = arith.mulf %6, %6 : vector<32x128xf32>
    %cst_21 = arith.constant 1.000000e+00 : f32
    %27 = vector.broadcast %cst_21 : f32 to vector<32x128xf32>
    %28 = arith.subf %27, %26 : vector<32x128xf32>
    %29 = arith.mulf %25, %28 : vector<32x128xf32>
    %c0_22 = arith.constant 0 : index
    %c0_23 = arith.constant 0 : index
    %30 = vector.load %arg9[%c0_22, %c0_23] : memref<3x32xf32, #tpu.memory_space<vmem>>, vector<3x32xf32>
    %cst_24 = arith.constant dense<0.000000e+00> : vector<3x128xf32>
    %31 = tpu.matmul %30, %29, %cst_24 {dimension_numbers = #tpu.dot_dimension_numbers<[1], [0], [0], [1], [0, 0, 1, 1], [], []>} : vector<3x32xf32>, vector<32x128xf32>, vector<3x128xf32> -> vector<3x128xf32>
    %32 = tpu.concatenate %17, %31 in 0 : vector<1x128xf32>, vector<3x128xf32> -> vector<4x128xf32>
    %c0_25 = arith.constant 0 : index
    %c0_26 = arith.constant 0 : index
    %33 = vector.load %arg11[%c0_25, %c0_26] : memref<4x128xf32, #tpu.memory_space<vmem>>, vector<4x128xf32>
    tpu.vector_store %arg11[%c0_25, %c0_26], %32 {strides = array<i32>} : memref<4x128xf32, #tpu.memory_space<vmem>>, vector<4x128xf32>,
    return
  }
  func.func @transform_0(%arg0: i32) -> (i32, i32) {
    %c0_i32 = arith.constant 0 : i32
    %c0_i32_0 = arith.constant 0 : i32
    return %c0_i32, %arg0 : i32, i32
  }
  func.func @transform_1(%arg0: i32) -> (i32, i32) {
    %c0_i32 = arith.constant 0 : i32
    %c0_i32_0 = arith.constant 0 : i32
    %c0_i32_1 = arith.constant 0 : i32
    return %c0_i32, %c0_i32_0 : i32, i32
  }
  func.func @transform_2(%arg0: i32) -> (i32, i32) {
    %c0_i32 = arith.constant 0 : i32
    %c0_i32_0 = arith.constant 0 : i32
    %c0_i32_1 = arith.constant 0 : i32
    return %c0_i32, %c0_i32_0 : i32, i32
  }
  func.func @transform_3(%arg0: i32) -> (i32, i32) {
    %c0_i32 = arith.constant 0 : i32
    %c0_i32_0 = arith.constant 0 : i32
    %c0_i32_1 = arith.constant 0 : i32
    return %c0_i32, %c0_i32_0 : i32, i32
  }
  func.func @transform_4(%arg0: i32) -> (i32, i32) {
    %c0_i32 = arith.constant 0 : i32
    %c0_i32_0 = arith.constant 0 : i32
    %c0_i32_1 = arith.constant 0 : i32
    return %c0_i32, %c0_i32_0 : i32, i32
  }
  func.func @transform_5(%arg0: i32) -> (i32, i32) {
    %c0_i32 = arith.constant 0 : i32
    %c0_i32_0 = arith.constant 0 : i32
    %c0_i32_1 = arith.constant 0 : i32
    return %c0_i32, %c0_i32_0 : i32, i32
  }
  func.func @transform_6(%arg0: i32) -> (i32, i32) {
    %c0_i32 = arith.constant 0 : i32
    %c0_i32_0 = arith.constant 0 : i32
    %c0_i32_1 = arith.constant 0 : i32
    return %c0_i32, %c0_i32_0 : i32, i32
  }
  func.func @transform_7(%arg0: i32) -> (i32, i32) {
    %c0_i32 = arith.constant 0 : i32
    %c0_i32_0 = arith.constant 0 : i32
    %c0_i32_1 = arith.constant 0 : i32
    return %c0_i32, %c0_i32_0 : i32, i32
  }
  func.func @transform_8(%arg0: i32) -> (i32, i32) {
    %c0_i32 = arith.constant 0 : i32
    %c0_i32_0 = arith.constant 0 : i32
    %c0_i32_1 = arith.constant 0 : i32
    return %c0_i32, %c0_i32_0 : i32, i32
  }
  func.func @transform_9(%arg0: i32) -> (i32, i32) {
    %c0_i32 = arith.constant 0 : i32
    %c0_i32_0 = arith.constant 0 : i32
    %c0_i32_1 = arith.constant 0 : i32
    return %c0_i32, %c0_i32_0 : i32, i32
  }
  func.func @transform_10(%arg0: i32) -> (i32, i32) {
    %c0_i32 = arith.constant 0 : i32
    %c0_i32_0 = arith.constant 0 : i32
    return %c0_i32, %arg0 : i32, i32
  }
}

</mosaic_0001>

<llo_original>
// kernel: _derivnet_call.1
$region0: #{_derivnet_call.1}
  #allocation0 [shape = 'u32[]', space=smem, size = 0x4, offset = 0x4, fixed_abs, tag = 'smem constant byte address 0x4 - core index']
  #allocation1 [shape = 'u32[144,128]{1,0:T(1,128)}', space=vmem, size = 0x12000, scoped, tag = 'internal scratch']
  #allocation2 [shape = 'f32[1,1]{1,0:T(1,128)S(6)}', space=smem, size = 0x200, scoped, tag = 'scoped memory for _derivnet_call.1']
  %s0 = inlined_call_operand.vmem [shape: f32[3,384], index: 0, kind: input, shape index: {}]
  %s1 = inlined_call_operand.vmem [shape: f32[32,3], index: 1, kind: input, shape index: {}]
  %s2 = inlined_call_operand.vmem [shape: f32[32,1], index: 2, kind: input, shape index: {}]
  %s3 = inlined_call_operand.vmem [shape: f32[32,32], index: 3, kind: input, shape index: {}]
  %s4 = inlined_call_operand.vmem [shape: f32[32,1], index: 4, kind: input, shape index: {}]
  %s5 = inlined_call_operand.vmem [shape: f32[1,32], index: 5, kind: input, shape index: {}]
  %s6 = inlined_call_operand.vmem [shape: f32[32,1], index: 6, kind: input, shape index: {}]
  %s7 = inlined_call_operand.vmem [shape: f32[32,32], index: 7, kind: input, shape index: {}]
  %s8 = inlined_call_operand.vmem [shape: f32[3,32], index: 8, kind: input, shape index: {}]
  %s9 = inlined_call_operand.<no memory space> [shape: f32[1,1], index: 9, kind: input, shape index: {}]
  %s10 = inlined_call_operand.vmem [shape: f32[4,384], index: 10, kind: output, shape index: {}]
  %s11 = sld [smem:[#allocation0]]
  $region73: #{_derivnet_call.1} parent=0
    _
  %s13 = ssub.s32 1, %s11
  %s14 = scalar_select 0, %s13, %s11
  %15 = sst [smem:[#allocation2]] %s9
  loop: start=0, step=1, limit=5
  $region2: #{_derivnet_call.1} parent=0 // loop_pre_header
    _
  $region3: #{_derivnet_call.1} parent=0 // loop_header
    %s17 = sphi 0, %s21
    %p18 = scmp.ge.s32.totalorder %s17, 5
    %s27 = sphi 0, %s29
    %s30 = sphi 0, %s27
    %s31 = sphi 0, %s30
    %s47 = sphi 0, %s31
    %s51 = sphi 0, %s51
    %s53 = sphi 0, %s51
    %s54 = sphi 0, %s53
    %s68 = sphi 0, %s54
    %s72 = sphi 0, %s72
    %s74 = sphi 0, %s72
    %s75 = sphi 0, %s74
    %s89 = sphi 0, %s75
    %s93 = sphi 0, %s93
    %s95 = sphi 0, %s93
    %s96 = sphi 0, %s95
    %s110 = sphi 0, %s96
    %s114 = sphi 0, %s114
    %s116 = sphi 0, %s114
    %s117 = sphi 0, %s116
    %s131 = sphi 0, %s117
    %s135 = sphi 0, %s135
    %s137 = sphi 0, %s135
    %s138 = sphi 0, %s137
    %s152 = sphi 0, %s138
    %s156 = sphi 0, %s156
    %s158 = sphi 0, %s156
    %s159 = sphi 0, %s158
    %s173 = sphi 0, %s159
    %s177 = sphi 0, %s177
    %s179 = sphi 0, %s177
    %s180 = sphi 0, %s179
    %s194 = sphi 0, %s180
    %s198 = sphi 0, %s198
    %s200 = sphi 0, %s198
    %s201 = sphi 0, %s200
    %s215 = sphi 0, %s201
    %s219 = sphi 0, %s219
    %s221 = sphi 0, %s219
    %s222 = sphi 0, %s221
    %s236 = sphi 0, %s222
    %s242 = sphi 0, %s244
    %s245 = sphi 0, %s242
    %s246 = sphi 0, %s245
    %s262 = sphi 0, %s246
  $region4: #{_derivnet_call.1} parent=0 // loop_header_branch
    %20 = sbr.rel (%p18) target = $region8
  $region5: #{_derivnet_call.1} parent=0 // loop_body
    %s22 = ssub.s32 %s17, 1
    %s23 = ssub.s32 %s17, 2
    %s24 = sadd.s32 %s17, 1
    %s25 = ssub.s32 %s17, %s24
    %p26 = scmp.eq.s32.totalorder %s25, 0
    %s28 = sadd.s32 %s27, 1
    %s29 = scalar_select %p26, %s27, %s28
    %p32 = pneg %p26
    %p33 = scmp.eq.s32.totalorder %s17, 2
    %p34 = por %p32, %p33
    %p35 = scmp.ne.s32.totalorder %s27, %s30
    %p36 = scmp.eq.s32.totalorder %s17, 0
    %p37 = por %p35, %p36
    %p38 = scmp.ne.s32.totalorder %s27, %s30
    %p39 = scmp.eq.s32.totalorder %s22, 2
    %p40 = por %p38, %p39
    %p41 = scmp.ne.s32.totalorder %s30, %s31
    %p42 = scmp.eq.s32.totalorder %s22, 0
    %p43 = por %p41, %p42
    %p44 = scmp.ne.s32.totalorder %s30, %s31
    %p45 = scmp.eq.s32.totalorder %s23, 2
    %p46 = por %p44, %p45
    %p48 = scmp.ne.s32.totalorder %s31, %s47
    %p49 = scmp.eq.s32.totalorder %s23, 0
    %p50 = por %p48, %p49
    %s52 = sadd.s32 %s51, 1
    %p55 = scmp.eq.s32.totalorder %s17, 2
    %p56 = scmp.ne.s32.totalorder %s51, %s53
    %p57 = scmp.eq.s32.totalorder %s17, 0
    %p58 = por %p56, %p57
    %p59 = scmp.ne.s32.totalorder %s51, %s53
    %p60 = scmp.eq.s32.totalorder %s22, 2
    %p61 = por %p59, %p60
    %p62 = scmp.ne.s32.totalorder %s53, %s54
    %p63 = scmp.eq.s32.totalorder %s22, 0
    %p64 = por %p62, %p63
    %p65 = scmp.ne.s32.totalorder %s53, %s54
    %p66 = scmp.eq.s32.totalorder %s23, 2
    %p67 = por %p65, %p66
    %p69 = scmp.ne.s32.totalorder %s54, %s68
    %p70 = scmp.eq.s32.totalorder %s23, 0
    %p71 = por %p69, %p70
    %s73 = sadd.s32 %s72, 1
    %p76 = scmp.eq.s32.totalorder %s17, 2
    %p77 = scmp.ne.s32.totalorder %s72, %s74
    %p78 = scmp.eq.s32.totalorder %s17, 0
    %p79 = por %p77, %p78
    %p80 = scmp.ne.s32.totalorder %s72, %s74
    %p81 = scmp.eq.s32.totalorder %s22, 2
    %p82 = por %p80, %p81
    %p83 = scmp.ne.s32.totalorder %s74, %s75
    %p84 = scmp.eq.s32.totalorder %s22, 0
    %p85 = por %p83, %p84
    %p86 = scmp.ne.s32.totalorder %s74, %s75
    %p87 = scmp.eq.s32.totalorder %s23, 2
    %p88 = por %p86, %p87
    %p90 = scmp.ne.s32.totalorder %s75, %s89
    %p91 = scmp.eq.s32.totalorder %s23, 0
    %p92 = por %p90, %p91
    %s94 = sadd.s32 %s93, 1
    %p97 = scmp.eq.s32.totalorder %s17, 2
    %p98 = scmp.ne.s32.totalorder %s93, %s95
    %p99 = scmp.eq.s32.totalorder %s17, 0
    %p100 = por %p98, %p99
    %p101 = scmp.ne.s32.totalorder %s93, %s95
    %p102 = scmp.eq.s32.totalorder %s22, 2
    %p103 = por %p101, %p102
    %p104 = scmp.ne.s32.totalorder %s95, %s96
    %p105 = scmp.eq.s32.totalorder %s22, 0
    %p106 = por %p104, %p105
    %p107 = scmp.ne.s32.totalorder %s95, %s96
    %p108 = scmp.eq.s32.totalorder %s23, 2
    %p109 = por %p107, %p108
    %p111 = scmp.ne.s32.totalorder %s96, %s110
    %p112 = scmp.eq.s32.totalorder %s23, 0
    %p113 = por %p111, %p112
    %s115 = sadd.s32 %s114, 1
    %p118 = scmp.eq.s32.totalorder %s17, 2
    %p119 = scmp.ne.s32.totalorder %s114, %s116
    %p120 = scmp.eq.s32.totalorder %s17, 0
    %p121 = por %p119, %p120
    %p122 = scmp.ne.s32.totalorder %s114, %s116
    %p123 = scmp.eq.s32.totalorder %s22, 2
    %p124 = por %p122, %p123
    %p125 = scmp.ne.s32.totalorder %s116, %s117
    %p126 = scmp.eq.s32.totalorder %s22, 0
    %p127 = por %p125, %p126
    %p128 = scmp.ne.s32.totalorder %s116, %s117
    %p129 = scmp.eq.s32.totalorder %s23, 2
    %p130 = por %p128, %p129
    %p132 = scmp.ne.s32.totalorder %s117, %s131
    %p133 = scmp.eq.s32.totalorder %s23, 0
    %p134 = por %p132, %p133
    %s136 = sadd.s32 %s135, 1
    %p139 = scmp.eq.s32.totalorder %s17, 2
    %p140 = scmp.ne.s32.totalorder %s135, %s137
    %p141 = scmp.eq.s32.totalorder %s17, 0
    %p142 = por %p140, %p141
    %p143 = scmp.ne.s32.totalorder %s135, %s137
    %p144 = scmp.eq.s32.totalorder %s22, 2
    %p145 = por %p143, %p144
    %p146 = scmp.ne.s32.totalorder %s137, %s138
    %p147 = scmp.eq.s32.totalorder %s22, 0
    %p148 = por %p146, %p147
    %p149 = scmp.ne.s32.totalorder %s137, %s138
    %p150 = scmp.eq.s32.totalorder %s23, 2
    %p151 = por %p149, %p150
    %p153 = scmp.ne.s32.totalorder %s138, %s152
    %p154 = scmp.eq.s32.totalorder %s23, 0
    %p155 = por %p153, %p154
    %s157 = sadd.s32 %s156, 1
    %p160 = scmp.eq.s32.totalorder %s17, 2
    %p161 = scmp.ne.s32.totalorder %s156, %s158
    %p162 = scmp.eq.s32.totalorder %s17, 0
    %p163 = por %p161, %p162
    %p164 = scmp.ne.s32.totalorder %s156, %s158
    %p165 = scmp.eq.s32.totalorder %s22, 2
    %p166 = por %p164, %p165
    %p167 = scmp.ne.s32.totalorder %s158, %s159
    %p168 = scmp.eq.s32.totalorder %s22, 0
    %p169 = por %p167, %p168
    %p170 = scmp.ne.s32.totalorder %s158, %s159
    %p171 = scmp.eq.s32.totalorder %s23, 2
    %p172 = por %p170, %p171
    %p174 = scmp.ne.s32.totalorder %s159, %s173
    %p175 = scmp.eq.s32.totalorder %s23, 0
    %p176 = por %p174, %p175
    %s178 = sadd.s32 %s177, 1
    %p181 = scmp.eq.s32.totalorder %s17, 2
    %p182 = scmp.ne.s32.totalorder %s177, %s179
    %p183 = scmp.eq.s32.totalorder %s17, 0
    %p184 = por %p182, %p183
    %p185 = scmp.ne.s32.totalorder %s177, %s179
    %p186 = scmp.eq.s32.totalorder %s22, 2
    %p187 = por %p185, %p186
    %p188 = scmp.ne.s32.totalorder %s179, %s180
    %p189 = scmp.eq.s32.totalorder %s22, 0
    %p190 = por %p188, %p189
    %p191 = scmp.ne.s32.totalorder %s179, %s180
    %p192 = scmp.eq.s32.totalorder %s23, 2
    %p193 = por %p191, %p192
    %p195 = scmp.ne.s32.totalorder %s180, %s194
    %p196 = scmp.eq.s32.totalorder %s23, 0
    %p197 = por %p195, %p196
    %s199 = sadd.s32 %s198, 1
    %p202 = scmp.eq.s32.totalorder %s17, 2
    %p203 = scmp.ne.s32.totalorder %s198, %s200
    %p204 = scmp.eq.s32.totalorder %s17, 0
    %p205 = por %p203, %p204
    %p206 = scmp.ne.s32.totalorder %s198, %s200
    %p207 = scmp.eq.s32.totalorder %s22, 2
    %p208 = por %p206, %p207
    %p209 = scmp.ne.s32.totalorder %s200, %s201
    %p210 = scmp.eq.s32.totalorder %s22, 0
    %p211 = por %p209, %p210
    %p212 = scmp.ne.s32.totalorder %s200, %s201
    %p213 = scmp.eq.s32.totalorder %s23, 2
    %p214 = por %p212, %p213
    %p216 = scmp.ne.s32.totalorder %s201, %s215
    %p217 = scmp.eq.s32.totalorder %s23, 0
    %p218 = por %p216, %p217
    %s220 = sadd.s32 %s219, 1
    %p223 = scmp.eq.s32.totalorder %s17, 2
    %p224 = scmp.ne.s32.totalorder %s219, %s221
    %p225 = scmp.eq.s32.totalorder %s17, 0
    %p226 = por %p224, %p225
    %p227 = scmp.ne.s32.totalorder %s219, %s221
    %p228 = scmp.eq.s32.totalorder %s22, 2
    %p229 = por %p227, %p228
    %p230 = scmp.ne.s32.totalorder %s221, %s222
    %p231 = scmp.eq.s32.totalorder %s22, 0
    %p232 = por %p230, %p231
    %p233 = scmp.ne.s32.totalorder %s221, %s222
    %p234 = scmp.eq.s32.totalorder %s23, 2
    %p235 = por %p233, %p234
    %p237 = scmp.ne.s32.totalorder %s222, %s236
    %p238 = scmp.eq.s32.totalorder %s23, 0
    %p239 = por %p237, %p238
    %s240 = ssub.s32 %s17, %s24
    %p241 = scmp.eq.s32.totalorder %s240, 0
    %s243 = sadd.s32 %s242, 1
    %s244 = scalar_select %p241, %s242, %s243
    %p247 = pneg %p241
    %p248 = scmp.eq.s32.totalorder %s17, 2
    %p249 = por %p247, %p248
    %p250 = scmp.ne.s32.totalorder %s242, %s245
    %p251 = scmp.eq.s32.totalorder %s17, 0
    %p252 = por %p250, %p251
    %p253 = scmp.ne.s32.totalorder %s242, %s245
    %p254 = scmp.eq.s32.totalorder %s22, 2
    %p255 = por %p253, %p254
    %p256 = scmp.ne.s32.totalorder %s245, %s246
    %p257 = scmp.eq.s32.totalorder %s22, 0
    %p258 = por %p256, %p257
    %p259 = scmp.ne.s32.totalorder %s245, %s246
    %p260 = scmp.eq.s32.totalorder %s23, 2
    %p261 = por %p259, %p260
    %p263 = scmp.ne.s32.totalorder %s246, %s262
    %p264 = scmp.eq.s32.totalorder %s23, 0
    %p265 = por %p263, %p264
    %p266 = scmp.le.s32.totalorder 1, %s17
    %p267 = scmp.lt.s32.totalorder %s17, 4
    %p268 = pnand %p266, %p267
    %p269 = pneg %p268
    // Predicated region
    $region9: #{_derivnet_call.1} parent=5 // pred_check
      _
    $region10: #{_derivnet_call.1} parent=5 // pred_check_branch
      %271 = sbr.rel (%p268) target = $region12
    $region11: #{_derivnet_call.1} parent=5 // pred_region
      %s272 = ssub.s32 %s17, 1
      // Predicated region
      $region13: #{_derivnet_call.1} parent=11 // pred_check
        %p273 = pneg %p64
      $region14: #{_derivnet_call.1} parent=11 // pred_check_branch
        %275 = sbr.rel (%p273) target = $region16
      $region15: #{_derivnet_call.1} parent=11 // pred_region
        _
      $region16: #{_derivnet_call.1} parent=11 // pred_fallthru
        _
      // Predicated region
      $region17: #{_derivnet_call.1} parent=11 // pred_check
        %p276 = pneg %p85
      $region18: #{_derivnet_call.1} parent=11 // pred_check_branch
        %278 = sbr.rel (%p276) target = $region20
      $region19: #{_derivnet_call.1} parent=11 // pred_region
        _
      $region20: #{_derivnet_call.1} parent=11 // pred_fallthru
        _
      // Predicated region
      $region21: #{_derivnet_call.1} parent=11 // pred_check
        %p279 = pneg %p106
      $region22: #{_derivnet_call.1} parent=11 // pred_check_branch
        %281 = sbr.rel (%p279) target = $region24
      $region23: #{_derivnet_call.1} parent=11 // pred_region
        _
      $region24: #{_derivnet_call.1} parent=11 // pred_fallthru
        _
      // Predicated region
      $region25: #{_derivnet_call.1} parent=11 // pred_check
        %p282 = pneg %p127
      $region26: #{_derivnet_call.1} parent=11 // pred_check_branch
        %284 = sbr.rel (%p282) target = $region28
      $region27: #{_derivnet_call.1} parent=11 // pred_region
        _
      $region28: #{_derivnet_call.1} parent=11 // pred_fallthru
        _
      // Predicated region
      $region29: #{_derivnet_call.1} parent=11 // pred_check
        %p285 = pneg %p148
      $region30: #{_derivnet_call.1} parent=11 // pred_check_branch
        %287 = sbr.rel (%p285) target = $region32
      $region31: #{_derivnet_call.1} parent=11 // pred_region
        _
      $region32: #{_derivnet_call.1} parent=11 // pred_fallthru
        _
      // Predicated region
      $region33: #{_derivnet_call.1} parent=11 // pred_check
        %p288 = pneg %p169
      $region34: #{_derivnet_call.1} parent=11 // pred_check_branch
        %290 = sbr.rel (%p288) target = $region36
      $region35: #{_derivnet_call.1} parent=11 // pred_region
        _
      $region36: #{_derivnet_call.1} parent=11 // pred_fallthru
        _
      // Predicated region
      $region37: #{_derivnet_call.1} parent=11 // pred_check
        %p291 = pneg %p190
      $region38: #{_derivnet_call.1} parent=11 // pred_check_branch
        %293 = sbr.rel (%p291) target = $region40
      $region39: #{_derivnet_call.1} parent=11 // pred_region
        _
      $region40: #{_derivnet_call.1} parent=11 // pred_fallthru
        _
      // Predicated region
      $region41: #{_derivnet_call.1} parent=11 // pred_check
        %p294 = pneg %p211
      $region42: #{_derivnet_call.1} parent=11 // pred_check_branch
        %296 = sbr.rel (%p294) target = $region44
      $region43: #{_derivnet_call.1} parent=11 // pred_region
        _
      $region44: #{_derivnet_call.1} parent=11 // pred_fallthru
        _
      // Predicated region
      $region45: #{_derivnet_call.1} parent=11 // pred_check
        %p297 = pneg %p232
      $region46: #{_derivnet_call.1} parent=11 // pred_check_branch
        %299 = sbr.rel (%p297) target = $region48
      $region47: #{_derivnet_call.1} parent=11 // pred_region
        _
      $region48: #{_derivnet_call.1} parent=11 // pred_fallthru
        _
    $region12: #{_derivnet_call.1} parent=5 // pred_fallthru
      _
    %p300 = scmp.lt.s32.totalorder %s17, 3
    // Predicated region
    $region49: #{_derivnet_call.1} parent=5 // pred_check
      %p301 = pneg %p300
    $region50: #{_derivnet_call.1} parent=5 // pred_check_branch
      %303 = sbr.rel (%p301) target = $region52
    $region51: #{_derivnet_call.1} parent=5 // pred_region
      // Predicated region
      $region53: #{_derivnet_call.1} parent=51 // pred_check
        %p304 = pneg %p37
      $region54: #{_derivnet_call.1} parent=51 // pred_check_branch
        %306 = sbr.rel (%p304) target = $region56
      $region55: #{_derivnet_call.1} parent=51 // pred_region
        %p307 = scmp.lt.s32.totalorder %s17, 2
        %s308 = scalar_select %p307, %s17, 2
        %s309 = smul.addr %s308, 4
        %s310 = scalar_lea.vmem %s0, %s309
      $region56: #{_derivnet_call.1} parent=51 // pred_fallthru
        _
    $region52: #{_derivnet_call.1} parent=5 // pred_fallthru
      _
    %p311 = scmp.le.s32.totalorder 1, %s17
    %p312 = scmp.lt.s32.totalorder %s17, 4
    %p313 = pnand %p311, %p312
    %p314 = pneg %p313
    // Predicated region
    $region57: #{_derivnet_call.1} parent=5 // pred_check
      _
    $region58: #{_derivnet_call.1} parent=5 // pred_check_branch
      %316 = sbr.rel (%p313) target = $region60
    $region59: #{_derivnet_call.1} parent=5 // pred_region
      %s317 = ssub.s32 %s17, 1
      %p318 = scmp.lt.s32.totalorder %s22, 2
      %s319 = scalar_select %p318, %s22, 2
      %s320 = smul.addr %s319, 4
      %s321 = scalar_lea.vmem %s0, %s320
      %p322 = pneg %p43
      %p323 = pneg %p40
      %p324 = pneg %p64
      %p325 = pneg %p61
      %p326 = pneg %p85
      %p327 = pneg %p82
      %p328 = pneg %p106
      %p329 = pneg %p103
      %p330 = pneg %p127
      %p331 = pneg %p124
      %p332 = pneg %p148
      %p333 = pneg %p145
      %p334 = pneg %p169
      %p335 = pneg %p166
      %p336 = pneg %p190
      %p337 = pneg %p187
      %p338 = pneg %p211
      %p339 = pneg %p208
      %p340 = pneg %p232
      %p341 = pneg %p229
      %p342 = pneg %p258
      %p343 = pneg %p255
      %p344 = scmp.lt.s32.totalorder %s22, 2
      %s345 = scalar_select %p344, %s22, 2
      %s346 = smul.addr %s345, 4
      %s347 = scalar_lea.vmem %s10, %s346
      %p348 = scmp.lt.s32.totalorder %s22, 2
      %s349 = scalar_select %p348, %s22, 2
      %s350 = smul.addr %s349, 4
      %s351 = scalar_lea.vmem %s0, %s350
      %p352 = scmp.lt.s32.totalorder %s22, 2
      %s353 = scalar_select %p352, %s22, 2
      %s354 = smul.addr %s353, 4
      %s355 = scalar_lea.vmem %s10, %s354
      %v356 = vld [vmem:[%s351] sm:$0x7]
      %v357 = vld [vmem:[%s1] sm:$0xff]
      %v358 = vld [vmem:[%s1 + $0x8] sm:$0xff]
      %v359 = vld [vmem:[%s1 + $0x10] sm:$0xff]
      %v360 = vld [vmem:[%s1 + $0x18] sm:$0xff]
      %v361 = vld [vmem:[%s2] sm:$0xff]
      %v362 = vld [vmem:[%s2 + $0x8] sm:$0xff]
      %v363 = vld [vmem:[%s2 + $0x10] sm:$0xff]
      %v364 = vld [vmem:[%s2 + $0x18] sm:$0xff]
      %366 = vset.pattern.permute.xlu0 0
      %367 = vperm.xlu0 %366, %v361
      %v368 = vpop.permute.xlu0 %367
      %371 = vset.pattern.permute.xlu0 0
      %372 = vperm.xlu0 %371, %v362
      %v373 = vpop.permute.xlu0 %372
      %376 = vset.pattern.permute.xlu0 0
      %377 = vperm.xlu0 %376, %v363
      %v378 = vpop.permute.xlu0 %377
      %381 = vset.pattern.permute.xlu0 0
      %382 = vperm.xlu0 %381, %v364
      %v383 = vpop.permute.xlu0 %382
      %vm385 = vcmask 23552
      %v387 = vsel %vm385, %v357, 0
      %v390 = vsel %vm385, %v358, 0
      %v393 = vsel %vm385, %v359, 0
      %v396 = vsel %vm385, %v360, 0
      %vm398 = vcmask 1042432
      %v400 = vsel %vm398, %v356, 0
      %402 = vmatprep.subr.mxu0 0.0
      %403 = vmatpush1.msra.mxu0 %v400
      %404 = vmatprep.subr.mxu0 0.0
      %405 = vmatpush1.msra.mxu0 0.0
      %406 = vmatprep.subr.mxu0 0.0
      %407 = vmatpush1.msra.mxu0 0.0
      %408 = vmatprep.subr.mxu0 0.0
      %409 = vmatpush1.msra.mxu0 0.0
      %410 = vmatprep.subr.mxu0 0.0
      %411 = vmatpush1.msra.mxu0 0.0
      %412 = vmatprep.subr.mxu0 0.0
      %413 = vmatpush1.msra.mxu0 0.0
      %414 = vmatprep.subr.mxu0 0.0
      %415 = vmatpush1.msra.mxu0 0.0
      %416 = vmatprep.subr.mxu0 0.0
      %417 = vmatpush1.msra.mxu0 0.0
      %418 = vmatprep.subr.mxu0 0.0
      %419 = vmatpush1.msra.mxu0 0.0
      %420 = vmatprep.subr.mxu0 0.0
      %421 = vmatpush1.msra.mxu0 0.0
      %422 = vmatprep.subr.mxu0 0.0
      %423 = vmatpush1.msra.mxu0 0.0
      %424 = vmatprep.subr.mxu0 0.0
      %425 = vmatpush1.msra.mxu0 0.0
      %426 = vmatprep.subr.mxu0 0.0
      %427 = vmatpush1.msra.mxu0 0.0
      %428 = vmatprep.subr.mxu0 0.0
      %429 = vmatpush1.msra.mxu0 0.0
      %430 = vmatprep.subr.mxu0 0.0
      %431 = vmatpush1.msra.mxu0 0.0
      %432 = vmatprep.subr.mxu0 0.0
      %433 = vmatpush1.msra.mxu0 0.0
      %434 = vmatprep.subr.mxu0 0.0
      %435 = vmatpush1.msra.mxu0 0.0
      %436 = vmatprep.subr.mxu0 0.0
      %437 = vmatpush1.msra.mxu0 0.0
      %438 = vmatprep.subr.mxu0 0.0
      %439 = vmatpush1.msra.mxu0 0.0
      %440 = vmatprep.subr.mxu0 0.0
      %441 = vmatpush1.msra.mxu0 0.0
      %442 = vmatprep.subr.mxu0 0.0
      %443 = vmatpush1.msra.mxu0 0.0
      %444 = vmatprep.subr.mxu0 0.0
      %445 = vmatpush1.msra.mxu0 0.0
      %446 = vmatprep.subr.mxu0 0.0
      %447 = vmatpush1.msra.mxu0 0.0
      %448 = vmatprep.subr.mxu0 0.0
      %449 = vmatpush1.msra.mxu0 0.0
      %450 = vmatprep.subr.mxu0 0.0
      %451 = vmatpush1.msra.mxu0 0.0
      %452 = vmatprep.subr.mxu0 0.0
      %453 = vmatpush1.msra.mxu0 0.0
      %454 = vmatprep.subr.mxu0 0.0
      %455 = vmatpush1.msra.mxu0 0.0
      %456 = vmatprep.subr.mxu0 0.0
      %457 = vmatpush1.msra.mxu0 0.0
      %458 = vmatprep.subr.mxu0 0.0
      %459 = vmatpush1.msra.mxu0 0.0
      %460 = vmatprep.subr.mxu0 0.0
      %461 = vmatpush1.msra.mxu0 0.0
      %462 = vmatprep.subr.mxu0 0.0
      %463 = vmatpush1.msra.mxu0 0.0
      %464 = vmatprep.subr.mxu0 0.0
      %465 = vmatpush1.msra.mxu0 0.0
      %466 = vmatprep.mubr.f32.mxu0 0.0
      %467 = vmatmul.mubr.f32.gmra.mrb[0].mxu0 %v387
      %v468 = vpop.f32.mrb[0].mxu0
      %v469 = vadd.f32 %v368, %v468
      %v470 = vpop.f32.mrb[0].mxu0
      %471 = vmatprep.mubr.f32.mxu0 0.0
      %472 = vmatmul.mubr.f32.gmra.mrb[0].mxu0 %v390
      %v473 = vpop.f32.mrb[0].mxu0
      %v474 = vadd.f32 %v373, %v473
      %v475 = vpop.f32.mrb[0].mxu0
      %476 = vmatprep.mubr.f32.mxu0 0.0
      %477 = vmatmul.mubr.f32.gmra.mrb[0].mxu0 %v393
      %v478 = vpop.f32.mrb[0].mxu0
      %v479 = vadd.f32 %v378, %v478
      %v480 = vpop.f32.mrb[0].mxu0
      %481 = vmatprep.mubr.f32.mxu0 0.0
      %482 = vmatmul.mubr.f32.gmra.mrb[0].mxu0 %v396
      %v483 = vpop.f32.mrb[0].mxu0
      %v484 = vadd.f32 %v383, %v483
      %v485 = vpop.f32.mrb[0].mxu0
      %486 = vdwg.mxu0
      %v487 = vtanh.pop %v469
      %v488 = vtanh.pop %v474
      %v489 = vtanh.pop %v479
      %v490 = vtanh.pop %v484
      %v491 = vld [vmem:[%s3] sm:$0xff]
      %v492 = vld [vmem:[%s3 + $0x8] sm:$0xff]
      %v493 = vld [vmem:[%s3 + $0x10] sm:$0xff]
      %v494 = vld [vmem:[%s3 + $0x18] sm:$0xff]
      %v495 = vld [vmem:[%s4] sm:$0xff]
      %v496 = vld [vmem:[%s4 + $0x8] sm:$0xff]
      %v497 = vld [vmem:[%s4 + $0x10] sm:$0xff]
      %v498 = vld [vmem:[%s4 + $0x18] sm:$0xff]
      %500 = vset.pattern.permute.xlu0 0
      %501 = vperm.xlu0 %500, %v495
      %v502 = vpop.permute.xlu0 %501
      %505 = vset.pattern.permute.xlu0 0
      %506 = vperm.xlu0 %505, %v496
      %v507 = vpop.permute.xlu0 %506
      %510 = vset.pattern.permute.xlu0 0
      %511 = vperm.xlu0 %510, %v497
      %v512 = vpop.permute.xlu0 %511
      %515 = vset.pattern.permute.xlu0 0
      %516 = vperm.xlu0 %515, %v498
      %v517 = vpop.permute.xlu0 %516
      %vm519 = vcmask 261120
      %v521 = vsel %vm519, %v491, 0
      %v524 = vsel %vm519, %v492, 0
      %v527 = vsel %vm519, %v493, 0
      %v530 = vsel %vm519, %v494, 0
      %532 = vmatprep.subr.mxu0 0.0
      %533 = vmatpush1.msra.mxu0 %v487
      %534 = vmatprep.subr.mxu0 0.0
      %535 = vmatpush1.msra.mxu0 %v488
      %536 = vmatprep.subr.mxu0 0.0
      %537 = vmatpush1.msra.mxu0 %v489
      %538 = vmatprep.subr.mxu0 0.0
      %539 = vmatpush1.msra.mxu0 %v490
      %540 = vmatprep.subr.mxu0 0.0
      %541 = vmatpush1.msra.mxu0 0.0
      %542 = vmatprep.subr.mxu0 0.0
      %543 = vmatpush1.msra.mxu0 0.0
      %544 = vmatprep.subr.mxu0 0.0
      %545 = vmatpush1.msra.mxu0 0.0
      %546 = vmatprep.subr.mxu0 0.0
      %547 = vmatpush1.msra.mxu0 0.0
      %548 = vmatprep.subr.mxu0 0.0
      %549 = vmatpush1.msra.mxu0 0.0
      %550 = vmatprep.subr.mxu0 0.0
      %551 = vmatpush1.msra.mxu0 0.0
      %552 = vmatprep.subr.mxu0 0.0
      %553 = vmatpush1.msra.mxu0 0.0
      %554 = vmatprep.subr.mxu0 0.0
      %555 = vmatpush1.msra.mxu0 0.0
      %556 = vmatprep.subr.mxu0 0.0
      %557 = vmatpush1.msra.mxu0 0.0
      %558 = vmatprep.subr.mxu0 0.0
      %559 = vmatpush1.msra.mxu0 0.0
      %560 = vmatprep.subr.mxu0 0.0
      %561 = vmatpush1.msra.mxu0 0.0
      %562 = vmatprep.subr.mxu0 0.0
      %563 = vmatpush1.msra.mxu0 0.0
      %564 = vmatprep.subr.mxu0 0.0
      %565 = vmatpush1.msra.mxu0 0.0
      %566 = vmatprep.subr.mxu0 0.0
      %567 = vmatpush1.msra.mxu0 0.0
      %568 = vmatprep.subr.mxu0 0.0
      %569 = vmatpush1.msra.mxu0 0.0
      %570 = vmatprep.subr.mxu0 0.0
      %571 = vmatpush1.msra.mxu0 0.0
      %572 = vmatprep.subr.mxu0 0.0
      %573 = vmatpush1.msra.mxu0 0.0
      %574 = vmatprep.subr.mxu0 0.0
      %575 = vmatpush1.msra.mxu0 0.0
      %576 = vmatprep.subr.mxu0 0.0
      %577 = vmatpush1.msra.mxu0 0.0
      %578 = vmatprep.subr.mxu0 0.0
      %579 = vmatpush1.msra.mxu0 0.0
      %580 = vmatprep.subr.mxu0 0.0
      %581 = vmatpush1.msra.mxu0 0.0
      %582 = vmatprep.subr.mxu0 0.0
      %583 = vmatpush1.msra.mxu0 0.0
      %584 = vmatprep.subr.mxu0 0.0
      %585 = vmatpush1.msra.mxu0 0.0
      %586 = vmatprep.subr.mxu0 0.0
      %587 = vmatpush1.msra.mxu0 0.0
      %588 = vmatprep.subr.mxu0 0.0
      %589 = vmatpush1.msra.mxu0 0.0
      %590 = vmatprep.subr.mxu0 0.0
      %591 = vmatpush1.msra.mxu0 0.0
      %592 = vmatprep.subr.mxu0 0.0
      %593 = vmatpush1.msra.mxu0 0.0
      %594 = vmatprep.subr.mxu0 0.0
      %595 = vmatpush1.msra.mxu0 0.0
      %596 = vmatprep.mubr.f32.mxu0 0.0
      %597 = vmatmul.mubr.f32.gmra.mrb[0].mxu0 %v521
      %v598 = vpop.f32.mrb[0].mxu0
      %v599 = vadd.f32 %v502, %v598
      %v600 = vpop.f32.mrb[0].mxu0
      %601 = vmatprep.mubr.f32.mxu0 0.0
      %602 = vmatmul.mubr.f32.gmra.mrb[0].mxu0 %v524
      %v603 = vpop.f32.mrb[0].mxu0
      %v604 = vadd.f32 %v507, %v603
      %v605 = vpop.f32.mrb[0].mxu0
      %606 = vmatprep.mubr.f32.mxu0 0.0
      %607 = vmatmul.mubr.f32.gmra.mrb[0].mxu0 %v527
      %v608 = vpop.f32.mrb[0].mxu0
      %v609 = vadd.f32 %v512, %v608
      %v610 = vpop.f32.mrb[0].mxu0
      %611 = vmatprep.mubr.f32.mxu0 0.0
      %612 = vmatmul.mubr.f32.gmra.mrb[0].mxu0 %v530
      %v613 = vpop.f32.mrb[0].mxu0
      %v614 = vadd.f32 %v517, %v613
      %v615 = vpop.f32.mrb[0].mxu0
      %616 = vdwg.mxu0
      %v617 = vtanh.pop %v599
      %v618 = vtanh.pop %v604
      %v619 = vtanh.pop %v609
      %v620 = vtanh.pop %v614
      %v621 = vld [vmem:[%s5] sm:$0x1]
      %s622 = sld [smem:[#allocation2]]
      %v623 = vstv %s622
      %v625 = vsel %vm519, %v621, 0
      %627 = vmatprep.subr.mxu0 0.0
      %628 = vmatpush1.msra.mxu0 %v617
      %629 = vmatprep.subr.mxu0 0.0
      %630 = vmatpush1.msra.mxu0 %v618
      %631 = vmatprep.subr.mxu0 0.0
      %632 = vmatpush1.msra.mxu0 %v619
      %633 = vmatprep.subr.mxu0 0.0
      %634 = vmatpush1.msra.mxu0 %v620
      %635 = vmatprep.subr.mxu0 0.0
      %636 = vmatpush1.msra.mxu0 0.0
      %637 = vmatprep.subr.mxu0 0.0
      %638 = vmatpush1.msra.mxu0 0.0
      %639 = vmatprep.subr.mxu0 0.0
      %640 = vmatpush1.msra.mxu0 0.0
      %641 = vmatprep.subr.mxu0 0.0
      %642 = vmatpush1.msra.mxu0 0.0
      %643 = vmatprep.subr.mxu0 0.0
      %644 = vmatpush1.msra.mxu0 0.0
      %645 = vmatprep.subr.mxu0 0.0
      %646 = vmatpush1.msra.mxu0 0.0
      %647 = vmatprep.subr.mxu0 0.0
      %648 = vmatpush1.msra.mxu0 0.0
      %649 = vmatprep.subr.mxu0 0.0
      %650 = vmatpush1.msra.mxu0 0.0
      %651 = vmatprep.subr.mxu0 0.0
      %652 = vmatpush1.msra.mxu0 0.0
      %653 = vmatprep.subr.mxu0 0.0
      %654 = vmatpush1.msra.mxu0 0.0
      %655 = vmatprep.subr.mxu0 0.0
      %656 = vmatpush1.msra.mxu0 0.0
      %657 = vmatprep.subr.mxu0 0.0
      %658 = vmatpush1.msra.mxu0 0.0
      %659 = vmatprep.subr.mxu0 0.0
      %660 = vmatpush1.msra.mxu0 0.0
      %661 = vmatprep.subr.mxu0 0.0
      %662 = vmatpush1.msra.mxu0 0.0
      %663 = vmatprep.subr.mxu0 0.0
      %664 = vmatpush1.msra.mxu0 0.0
      %665 = vmatprep.subr.mxu0 0.0
      %666 = vmatpush1.msra.mxu0 0.0
      %667 = vmatprep.subr.mxu0 0.0
      %668 = vmatpush1.msra.mxu0 0.0
      %669 = vmatprep.subr.mxu0 0.0
      %670 = vmatpush1.msra.mxu0 0.0
      %671 = vmatprep.subr.mxu0 0.0
      %672 = vmatpush1.msra.mxu0 0.0
      %673 = vmatprep.subr.mxu0 0.0
      %674 = vmatpush1.msra.mxu0 0.0
      %675 = vmatprep.subr.mxu0 0.0
      %676 = vmatpush1.msra.mxu0 0.0
      %677 = vmatprep.subr.mxu0 0.0
      %678 = vmatpush1.msra.mxu0 0.0
      %679 = vmatprep.subr.mxu0 0.0
      %680 = vmatpush1.msra.mxu0 0.0
      %681 = vmatprep.subr.mxu0 0.0
      %682 = vmatpush1.msra.mxu0 0.0
      %683 = vmatprep.subr.mxu0 0.0
      %684 = vmatpush1.msra.mxu0 0.0
      %685 = vmatprep.subr.mxu0 0.0
      %686 = vmatpush1.msra.mxu0 0.0
      %687 = vmatprep.subr.mxu0 0.0
      %688 = vmatpush1.msra.mxu0 0.0
      %689 = vmatprep.subr.mxu0 0.0
      %690 = vmatpush1.msra.mxu0 0.0
      %691 = vmatprep.mubr.f32.mxu0 0.0
      %692 = vmatmul.mubr.f32.gmra.mrb[0].mxu0 %v625
      %v693 = vpop.f32.mrb[0].mxu0
      %v694 = vadd.f32 %v623, %v693
      %v695 = vpop.f32.mrb[0].mxu0
      %696 = vdwg.mxu0
      %v697 = vmul.f32 %v617, %v617
      %v698 = vmul.f32 %v618, %v618
      %v699 = vmul.f32 %v619, %v619
      %v700 = vmul.f32 %v620, %v620
      %v701 = vsub.f32 1.0, %v697
      %v702 = vsub.f32 1.0, %v698
      %v703 = vsub.f32 1.0, %v699
      %v704 = vsub.f32 1.0, %v700
      %v705 = vld [vmem:[%s6] sm:$0xff]
      %v706 = vld [vmem:[%s6 + $0x8] sm:$0xff]
      %v707 = vld [vmem:[%s6 + $0x10] sm:$0xff]
      %v708 = vld [vmem:[%s6 + $0x18] sm:$0xff]
      %710 = vset.pattern.permute.xlu0 0
      %711 = vperm.xlu0 %710, %v705
      %v712 = vpop.permute.xlu0 %711
      %715 = vset.pattern.permute.xlu0 0
      %716 = vperm.xlu0 %715, %v706
      %v717 = vpop.permute.xlu0 %716
      %720 = vset.pattern.permute.xlu0 0
      %721 = vperm.xlu0 %720, %v707
      %v722 = vpop.permute.xlu0 %721
      %725 = vset.pattern.permute.xlu0 0
      %726 = vperm.xlu0 %725, %v708
      %v727 = vpop.permute.xlu0 %726
      %v729 = vmul.f32 %v701, %v712
      %v730 = vmul.f32 %v702, %v717
      %v731 = vmul.f32 %v703, %v722
      %v732 = vmul.f32 %v704, %v727
      %v733 = vld [vmem:[%s7] sm:$0xff]
      %v734 = vld [vmem:[%s7 + $0x8] sm:$0xff]
      %v735 = vld [vmem:[%s7 + $0x10] sm:$0xff]
      %v736 = vld [vmem:[%s7 + $0x18] sm:$0xff]
      %v738 = vsel %vm519, %v733, 0
      %v741 = vsel %vm519, %v734, 0
      %v744 = vsel %vm519, %v735, 0
      %v747 = vsel %vm519, %v736, 0
      %749 = vmatprep.subr.mxu0 0.0
      %750 = vmatpush1.msra.mxu0 %v729
      %751 = vmatprep.subr.mxu0 0.0
      %752 = vmatpush1.msra.mxu0 %v730
      %753 = vmatprep.subr.mxu0 0.0
      %754 = vmatpush1.msra.mxu0 %v731
      %755 = vmatprep.subr.mxu0 0.0
      %756 = vmatpush1.msra.mxu0 %v732
      %757 = vmatprep.subr.mxu0 0.0
      %758 = vmatpush1.msra.mxu0 0.0
      %759 = vmatprep.subr.mxu0 0.0
      %760 = vmatpush1.msra.mxu0 0.0
      %761 = vmatprep.subr.mxu0 0.0
      %762 = vmatpush1.msra.mxu0 0.0
      %763 = vmatprep.subr.mxu0 0.0
      %764 = vmatpush1.msra.mxu0 0.0
      %765 = vmatprep.subr.mxu0 0.0
      %766 = vmatpush1.msra.mxu0 0.0
      %767 = vmatprep.subr.mxu0 0.0
      %768 = vmatpush1.msra.mxu0 0.0
      %769 = vmatprep.subr.mxu0 0.0
      %770 = vmatpush1.msra.mxu0 0.0
      %771 = vmatprep.subr.mxu0 0.0
      %772 = vmatpush1.msra.mxu0 0.0
      %773 = vmatprep.subr.mxu0 0.0
      %774 = vmatpush1.msra.mxu0 0.0
      %775 = vmatprep.subr.mxu0 0.0
      %776 = vmatpush1.msra.mxu0 0.0
      %777 = vmatprep.subr.mxu0 0.0
      %778 = vmatpush1.msra.mxu0 0.0
      %779 = vmatprep.subr.mxu0 0.0
      %780 = vmatpush1.msra.mxu0 0.0
      %781 = vmatprep.subr.mxu0 0.0
      %782 = vmatpush1.msra.mxu0 0.0
      %783 = vmatprep.subr.mxu0 0.0
      %784 = vmatpush1.msra.mxu0 0.0
      %785 = vmatprep.subr.mxu0 0.0
      %786 = vmatpush1.msra.mxu0 0.0
      %787 = vmatprep.subr.mxu0 0.0
      %788 = vmatpush1.msra.mxu0 0.0
      %789 = vmatprep.subr.mxu0 0.0
      %790 = vmatpush1.msra.mxu0 0.0
      %791 = vmatprep.subr.mxu0 0.0
      %792 = vmatpush1.msra.mxu0 0.0
      %793 = vmatprep.subr.mxu0 0.0
      %794 = vmatpush1.msra.mxu0 0.0
      %795 = vmatprep.subr.mxu0 0.0
      %796 = vmatpush1.msra.mxu0 0.0
      %797 = vmatprep.subr.mxu0 0.0
      %798 = vmatpush1.msra.mxu0 0.0
      %799 = vmatprep.subr.mxu0 0.0
      %800 = vmatpush1.msra.mxu0 0.0
      %801 = vmatprep.subr.mxu0 0.0
      %802 = vmatpush1.msra.mxu0 0.0
      %803 = vmatprep.subr.mxu0 0.0
      %804 = vmatpush1.msra.mxu0 0.0
      %805 = vmatprep.subr.mxu0 0.0
      %806 = vmatpush1.msra.mxu0 0.0
      %807 = vmatprep.subr.mxu0 0.0
      %808 = vmatpush1.msra.mxu0 0.0
      %809 = vmatprep.subr.mxu0 0.0
      %810 = vmatpush1.msra.mxu0 0.0
      %811 = vmatprep.subr.mxu0 0.0
      %812 = vmatpush1.msra.mxu0 0.0
      %813 = vmatprep.mubr.f32.mxu0 0.0
      %814 = vmatmul.mubr.f32.gmra.mrb[0].mxu0 %v738
      %v815 = vpop.f32.mrb[0].mxu0
      %v816 = vadd.f32 0.0, %v815
      %v817 = vpop.f32.mrb[0].mxu0
      %818 = vmatprep.mubr.f32.mxu0 0.0
      %819 = vmatmul.mubr.f32.gmra.mrb[0].mxu0 %v741
      %v820 = vpop.f32.mrb[0].mxu0
      %v821 = vadd.f32 0.0, %v820
      %v822 = vpop.f32.mrb[0].mxu0
      %823 = vmatprep.mubr.f32.mxu0 0.0
      %824 = vmatmul.mubr.f32.gmra.mrb[0].mxu0 %v744
      %v825 = vpop.f32.mrb[0].mxu0
      %v826 = vadd.f32 0.0, %v825
      %v827 = vpop.f32.mrb[0].mxu0
      %828 = vmatprep.mubr.f32.mxu0 0.0
      %829 = vmatmul.mubr.f32.gmra.mrb[0].mxu0 %v747
      %v830 = vpop.f32.mrb[0].mxu0
      %v831 = vadd.f32 0.0, %v830
      %v832 = vpop.f32.mrb[0].mxu0
      %833 = vdwg.mxu0
      %v834 = vmul.f32 %v487, %v487
      %v835 = vmul.f32 %v488, %v488
      %v836 = vmul.f32 %v489, %v489
      %v837 = vmul.f32 %v490, %v490
      %v838 = vsub.f32 1.0, %v834
      %v839 = vsub.f32 1.0, %v835
      %v840 = vsub.f32 1.0, %v836
      %v841 = vsub.f32 1.0, %v837
      %v842 = vmul.f32 %v816, %v838
      %v843 = vmul.f32 %v821, %v839
      %v844 = vmul.f32 %v826, %v840
      %v845 = vmul.f32 %v831, %v841
      %v846 = vld [vmem:[%s8] sm:$0x7]
      %v848 = vsel %vm519, %v846, 0
      %850 = vmatprep.subr.mxu0 0.0
      %851 = vmatpush1.msra.mxu0 %v842
      %852 = vmatprep.subr.mxu0 0.0
      %853 = vmatpush1.msra.mxu0 %v843
      %854 = vmatprep.subr.mxu0 0.0
      %855 = vmatpush1.msra.mxu0 %v844
      %856 = vmatprep.subr.mxu0 0.0
      %857 = vmatpush1.msra.mxu0 %v845
      %858 = vmatprep.subr.mxu0 0.0
      %859 = vmatpush1.msra.mxu0 0.0
      %860 = vmatprep.subr.mxu0 0.0
      %861 = vmatpush1.msra.mxu0 0.0
      %862 = vmatprep.subr.mxu0 0.0
      %863 = vmatpush1.msra.mxu0 0.0
      %864 = vmatprep.subr.mxu0 0.0
      %865 = vmatpush1.msra.mxu0 0.0
      %866 = vmatprep.subr.mxu0 0.0
      %867 = vmatpush1.msra.mxu0 0.0
      %868 = vmatprep.subr.mxu0 0.0
      %869 = vmatpush1.msra.mxu0 0.0
      %870 = vmatprep.subr.mxu0 0.0
      %871 = vmatpush1.msra.mxu0 0.0
      %872 = vmatprep.subr.mxu0 0.0
      %873 = vmatpush1.msra.mxu0 0.0
      %874 = vmatprep.subr.mxu0 0.0
      %875 = vmatpush1.msra.mxu0 0.0
      %876 = vmatprep.subr.mxu0 0.0
      %877 = vmatpush1.msra.mxu0 0.0
      %878 = vmatprep.subr.mxu0 0.0
      %879 = vmatpush1.msra.mxu0 0.0
      %880 = vmatprep.subr.mxu0 0.0
      %881 = vmatpush1.msra.mxu0 0.0
      %882 = vmatprep.subr.mxu0 0.0
      %883 = vmatpush1.msra.mxu0 0.0
      %884 = vmatprep.subr.mxu0 0.0
      %885 = vmatpush1.msra.mxu0 0.0
      %886 = vmatprep.subr.mxu0 0.0
      %887 = vmatpush1.msra.mxu0 0.0
      %888 = vmatprep.subr.mxu0 0.0
      %889 = vmatpush1.msra.mxu0 0.0
      %890 = vmatprep.subr.mxu0 0.0
      %891 = vmatpush1.msra.mxu0 0.0
      %892 = vmatprep.subr.mxu0 0.0
      %893 = vmatpush1.msra.mxu0 0.0
      %894 = vmatprep.subr.mxu0 0.0
      %895 = vmatpush1.msra.mxu0 0.0
      %896 = vmatprep.subr.mxu0 0.0
      %897 = vmatpush1.msra.mxu0 0.0
      %898 = vmatprep.subr.mxu0 0.0
      %899 = vmatpush1.msra.mxu0 0.0
      %900 = vmatprep.subr.mxu0 0.0
      %901 = vmatpush1.msra.mxu0 0.0
      %902 = vmatprep.subr.mxu0 0.0
      %903 = vmatpush1.msra.mxu0 0.0
      %904 = vmatprep.subr.mxu0 0.0
      %905 = vmatpush1.msra.mxu0 0.0
      %906 = vmatprep.subr.mxu0 0.0
      %907 = vmatpush1.msra.mxu0 0.0
      %908 = vmatprep.subr.mxu0 0.0
      %909 = vmatpush1.msra.mxu0 0.0
      %910 = vmatprep.subr.mxu0 0.0
      %911 = vmatpush1.msra.mxu0 0.0
      %912 = vmatprep.subr.mxu0 0.0
      %913 = vmatpush1.msra.mxu0 0.0
      %914 = vmatprep.mubr.f32.mxu0 0.0
      %915 = vmatmul.mubr.f32.gmra.mrb[0].mxu0 %v848
      %v916 = vpop.f32.mrb[0].mxu0
      %v917 = vadd.f32 0.0, %v916
      %v918 = vpop.f32.mrb[0].mxu0
      %919 = vdwg.mxu0
      %v921 = vrot.slane %v917, 7
      %vm923 = vcmask 1040384
      %v924 = vsel %vm923, %v694, %v921
      %925 = vst [vmem:[%s355] sm:$0xf] %v924
      %p926 = scmp.lt.s32.totalorder %s22, 2
      %s927 = scalar_select %p926, %s22, 2
      %s928 = smul.addr %s927, 4
      %s929 = scalar_lea.vmem %s10, %s928
      // Predicated region
      $region61: #{_derivnet_call.1} parent=59 // pred_check
        %p930 = pneg %p255
      $region62: #{_derivnet_call.1} parent=59 // pred_check_branch
        %932 = sbr.rel (%p930) target = $region64
      $region63: #{_derivnet_call.1} parent=59 // pred_region
        _
      $region64: #{_derivnet_call.1} parent=59 // pred_fallthru
        _
    $region60: #{_derivnet_call.1} parent=5 // pred_fallthru
      _
    %p933 = scmp.le.s32.totalorder 2, %s17
    // Predicated region
    $region65: #{_derivnet_call.1} parent=5 // pred_check
      %p934 = pneg %p933
    $region66: #{_derivnet_call.1} parent=5 // pred_check_branch
      %936 = sbr.rel (%p934) target = $region68
    $region67: #{_derivnet_call.1} parent=5 // pred_region
      %s937 = ssub.s32 %s17, 2
      // Predicated region
      $region69: #{_derivnet_call.1} parent=67 // pred_check
        %p938 = pneg %p261
      $region70: #{_derivnet_call.1} parent=67 // pred_check_branch
        %940 = sbr.rel (%p938) target = $region72
      $region71: #{_derivnet_call.1} parent=67 // pred_region
        %p941 = scmp.lt.s32.totalorder %s23, 2
        %s942 = scalar_select %p941, %s23, 2
        %s943 = smul.addr %s942, 4
        %s944 = scalar_lea.vmem %s10, %s943
      $region72: #{_derivnet_call.1} parent=67 // pred_fallthru
        _
    $region68: #{_derivnet_call.1} parent=5 // pred_fallthru
      _
  $region6: #{_derivnet_call.1} parent=0 // loop_footer
    %s21 = sadd.s32 1, %s17
  $region7: #{_derivnet_call.1} parent=0 // loop_footer_branch
    %16 = sbr.rel target = $region3
  $region8: #{_derivnet_call.1} parent=0 // loop_exit
    _

</llo_original>
